<compile_context>
chip_gen: v7x
topology: tpu7x:2x2x1
jax: 0.10.0
libtpu: 0.0.40
codegen_flags: <defaults>
</compile_context>

<pallas_src>
import math

import jax
import jax.numpy as jnp
from jax import lax
from jax.experimental import pallas as pl
from jax.experimental.pallas import tpu as pltpu

LANE = 128
# Leave headroom below v7x's 64 MiB physical VMEM, while still raising the default
# scoped limit enough for the larger tiles on v5e/v6e (128 MiB physical).
_VMEM_LIMIT_BYTES = 48 * 1024 * 1024


def _round_up(n, m):
    return ((n + m - 1) // m) * m


# --------------------------- stage 1: token-wise projections ---------------------------
def _proj_kernel(x_ref, wk_ref, bk_ref, wv_ref, bv_ref, qk_ref, v_ref):
    f32 = jnp.float32
    x = x_ref[0]                                                     # (tp, Cp) bf16
    # shared f_query/f_key: 1x1 conv (+ folded BN, + folded key scale) + ReLU
    qk = jnp.dot(x, wk_ref[...], preferred_element_type=f32) + bk_ref[...]
    qk_ref[0] = jnp.maximum(qk, 0.0).astype(qk_ref.dtype)
    # f_value: 1x1 conv
    v = jnp.dot(x, wv_ref[...], preferred_element_type=f32) + bv_ref[...]
    v_ref[0] = v.astype(v_ref.dtype)


# ------------------------ stage 2: flash attention + fused epilogue ------------------------
def _flash_kernel(q_ref, k_ref, v_ref, wo_ref, bo_ref, o_ref, m_sc, l_sc, acc_sc):
    ki = pl.program_id(2)

    @pl.when(ki == 0)
    def _():
        m_sc[...] = jnp.full_like(m_sc, -jnp.inf)
        l_sc[...] = jnp.zeros_like(l_sc)
        acc_sc[...] = jnp.zeros_like(acc_sc)

    f32 = jnp.float32
    bf16 = jnp.bfloat16

    q = q_ref[0]                                                     # (tq, Kp) bf16
    k = k_ref[0]                                                     # (tk, Kp) bf16
    v = v_ref[0]                                                     # (tk, Vp) bf16

    # sim = q @ k^T without forming k.T explicitly (scale already folded into q & k)
    sim = lax.dot_general(q, k, (((1,), (1,)), ((), ())),
                          preferred_element_type=f32)                # (tq, tk) f32

    # online softmax (running stats in f32)
    m_prev = m_sc[...]
    m_new = jnp.maximum(m_prev, jnp.max(sim, axis=-1, keepdims=True))
    alpha = jnp.exp(m_prev - m_new)
    p = jnp.exp(sim - m_new)                                         # unnormalized
    l_sc[...] = alpha * l_sc[...] + jnp.sum(p, axis=-1, keepdims=True)
    acc_sc[...] = alpha * acc_sc[...] + jnp.dot(p.astype(bf16), v,
                                                preferred_element_type=f32)
    m_sc[...] = m_new

    @pl.when(ki == pl.num_programs(2) - 1)
    def _():
        # deferred softmax normalization (EUP approx reciprocal)
        ctx = acc_sc[...] * pl.reciprocal(l_sc[...], approx=True)    # (tq, Vp) f32
        # fused epilogue: (W 1x1 conv) o (conv_bn_dropout 1x1 conv + folded BN) + ReLU
        out = jnp.dot(ctx.astype(bf16), wo_ref[...],
                      preferred_element_type=f32) + bo_ref[...]      # (tq, Cfp)
        o_ref[0] = jnp.maximum(out, 0.0).astype(o_ref.dtype)


def base_oc_context_forward(x_nchw, params, *, tq=256, tk=512):
    """BaseOC_Context_Module forward (sizes=[1]).

    params (channels-last matmul form):
      wk (C,K),  bk (K,)   f_key 1x1 conv with BN folded (shared with f_query)
      wv (C,V),  bv (V,)   f_value 1x1 conv
      ww (V,Co), bw (Co,)  attention W 1x1 conv (zero-init in the module)
      wf (Co,Cf),bf (Cf,)  conv_bn_dropout 1x1 conv with BN folded
    """
    N, C, H, W = x_nchw.shape
    HW = H * W
    K = params["wk"].shape[1]
    V = params["wv"].shape[1]
    Cf = params["wf"].shape[1]

    tq = min(tq, HW)
    tk = min(tk, HW)
    assert HW % tq == 0 and HW % tk == 0, "HW must be divisible by the tile sizes"

    Cp, Kp, Vp, Cfp = (_round_up(c, LANE) for c in (C, K, V, Cf))

    f32 = jnp.float32
    bf16 = jnp.bfloat16

    def pad2(a, r, c, dtype):
        a = a.astype(f32)
        return jnp.pad(a, ((0, r - a.shape[0]), (0, c - a.shape[1]))).astype(dtype)

    # tokens-major, channels-last, zero-padded channel lanes; bf16 halves DMA bytes
    x = jnp.transpose(x_nchw, (0, 2, 3, 1)).reshape(N, HW, C).astype(f32)
    x = jnp.pad(x, ((0, 0), (0, 0), (0, Cp - C))).astype(bf16)

    # fold key_channels**-0.5 into the SHARED q/k projection as sqrt(scale)
    # (ReLU is positive-homogeneous, so q and k each carry sqrt(scale)).
    sqrt_scale = float(K) ** -0.25
    wk = pad2(params["wk"] * sqrt_scale, Cp, Kp, bf16)
    bk = pad2((params["bk"] * sqrt_scale)[None, :], 1, Kp, f32)
    wv = pad2(params["wv"], Cp, Vp, bf16)
    bv = pad2(params["bv"][None, :], 1, Vp, f32)

    # fuse the two epilogue 1x1 convs (no nonlinearity between W and conv_bn_dropout)
    wo = params["ww"].astype(f32) @ params["wf"].astype(f32)                 # (V, Cf)
    bo = params["bw"].astype(f32) @ params["wf"].astype(f32) + params["bf"]  # (Cf,)
    wo = pad2(wo, Vp, Cfp, bf16)
    bo = pad2(bo[None, :], 1, Cfp, f32)

    const2 = lambda b, i: (0, 0)
    const3 = lambda b, qi, ki: (0, 0)

    # ---------------- stage 1: q/k (shared) and v projections, once per token ----------------
    tp = tk
    qk_proj, v_proj = pl.pallas_call(
        _proj_kernel,
        out_shape=(jax.ShapeDtypeStruct((N, HW, Kp), bf16),
                   jax.ShapeDtypeStruct((N, HW, Vp), bf16)),
        grid_spec=pltpu.PrefetchScalarGridSpec(
            num_scalar_prefetch=0,
            grid=(N, HW // tp),
            in_specs=[
                pl.BlockSpec((1, tp, Cp), lambda b, i: (b, i, 0)),
                pl.BlockSpec((Cp, Kp), const2), pl.BlockSpec((1, Kp), const2),
                pl.BlockSpec((Cp, Vp), const2), pl.BlockSpec((1, Vp), const2),
            ],
            out_specs=[pl.BlockSpec((1, tp, Kp), lambda b, i: (b, i, 0)),
                       pl.BlockSpec((1, tp, Vp), lambda b, i: (b, i, 0))],
        ),
        compiler_params=pltpu.CompilerParams(
            dimension_semantics=("parallel", "parallel"),
            vmem_limit_bytes=_VMEM_LIMIT_BYTES),
    )(x, wk, bk, wv, bv)

    # ---------------- stage 2: flash-style attention + fused epilogue ----------------
    out = pl.pallas_call(
        _flash_kernel,
        out_shape=jax.ShapeDtypeStruct((N, HW, Cfp), bf16),
        grid_spec=pltpu.PrefetchScalarGridSpec(
            num_scalar_prefetch=0,
            grid=(N, HW // tq, HW // tk),
            in_specs=[
                pl.BlockSpec((1, tq, Kp), lambda b, qi, ki: (b, qi, 0)),  # query tile
                pl.BlockSpec((1, tk, Kp), lambda b, qi, ki: (b, ki, 0)),  # key tile
                pl.BlockSpec((1, tk, Vp), lambda b, qi, ki: (b, ki, 0)),  # value tile
                pl.BlockSpec((Vp, Cfp), const3),                          # fused epilogue W
                pl.BlockSpec((1, Cfp), const3),                           # fused epilogue b
            ],
            out_specs=pl.BlockSpec((1, tq, Cfp), lambda b, qi, ki: (b, qi, 0)),
            scratch_shapes=[
                pltpu.VMEM((tq, 1), jnp.float32),    # running row max
                pltpu.VMEM((tq, 1), jnp.float32),    # running row sum
                pltpu.VMEM((tq, Vp), jnp.float32),   # output accumulator
            ],
        ),
        compiler_params=pltpu.CompilerParams(
            dimension_semantics=("parallel", "parallel", "arbitrary"),
            vmem_limit_bytes=_VMEM_LIMIT_BYTES),
    )(qk_proj, qk_proj, v_proj, wo, bo)

    out = out[:, :, :Cf].astype(f32).reshape(N, H, W, Cf)
    return jnp.transpose(out, (0, 3, 1, 2))


# ----------------------------- parameters & reference -----------------------------

def _conv_init(key, cin, cout):
    kw, kb = jax.random.split(key)
    bound = 1.0 / math.sqrt(cin)      # PyTorch 1x1-conv default bound
    w = jax.random.uniform(kw, (cout, cin), jnp.float32, -bound, bound)
    b = jax.random.uniform(kb, (cout,), jnp.float32, -bound, bound)
    return w, b


def _fold_bn(w_oc, b_oc, gamma, beta, mean, var, eps=1e-5):
    s = gamma / jnp.sqrt(var + eps)
    return w_oc * s[:, None], (b_oc - mean) * s + beta


def init_params(key, in_channels, out_channels, key_channels, value_channels):
    """Deterministic init mirroring the PyTorch module defaults (BN in inference form)."""
    k1, k2, k3 = jax.random.split(key, 3)

    wk_oc, bk_oc = _conv_init(k1, in_channels, key_channels)
    ones_k = jnp.ones((key_channels,), jnp.float32)
    zeros_k = jnp.zeros((key_channels,), jnp.float32)
    wk_oc, bk_oc = _fold_bn(wk_oc, bk_oc, ones_k, zeros_k, zeros_k, ones_k)

    wv_oc, bv_oc = _conv_init(k2, in_channels, value_channels)

    # W conv: nn.init.constant_(0)
    ww_oc = jnp.zeros((out_channels, value_channels), jnp.float32)
    bw_oc = jnp.zeros((out_channels,), jnp.float32)

    # conv_bn_dropout: Conv2d(in_channels, out_channels) + BN (defaults) + ReLU
    wf_oc, bf_oc = _conv_init(k3, in_channels, out_channels)
    ones_f = jnp.ones((out_channels,), jnp.float32)
    zeros_f = jnp.zeros((out_channels,), jnp.float32)
    wf_oc, bf_oc = _fold_bn(wf_oc, bf_oc, ones_f, zeros_f, zeros_f, ones_f)

    return dict(wk=wk_oc.T, bk=bk_oc, wv=wv_oc.T, bv=bv_oc,
                ww=ww_oc.T, bw=bw_oc, wf=wf_oc.T, bf=bf_oc)


def reference_forward(x_nchw, params, key_channels):
    """Pure-JAX fp32 reference of BaseOC_Context_Module.forward (scale=1, sizes=[1])."""
    N, C, H, W = x_nchw.shape
    x = jnp.transpose(x_nchw, (0, 2, 3, 1)).reshape(N, H * W, C).astype(jnp.float32)
    qk = jax.nn.relu(x @ params["wk"] + params["bk"])
    v = x @ params["wv"] + params["bv"]
    sim = jax.nn.softmax((key_channels ** -0.5) * (qk @ jnp.swapaxes(qk, -1, -2)), axis=-1)
    ctx = sim @ v
    attn = ctx @ params["ww"] + params["bw"]
    out = jax.nn.relu(attn @ params["wf"] + params["bf"])
    return jnp.transpose(out.reshape(N, H, W, -1), (0, 3, 1, 2))


if __name__ == "__main__":
    in_channels = 8
    out_channels = in_channels          # conv_bn_dropout requires out == in in this module
    key_channels, value_channels = 4, 8
    N, H, W = 2, 16, 16

    root = jax.random.PRNGKey(0)
    k_x, k_p, k_w = jax.random.split(root, 3)
    x = jax.random.normal(k_x, (N, in_channels, H, W), jnp.float32)
    params = init_params(k_p, in_channels, out_channels, key_channels, value_channels)

    # Faithful run (attention W zero-initialized, as in the PyTorch module).
    y = jax.block_until_ready(base_oc_context_forward(x, params))
    assert y.shape == (N, out_channels, H, W)
    y_ref = reference_forward(x, params, key_channels)
    assert jnp.allclose(y, y_ref, atol=3e-2, rtol=3e-2), \
        float(jnp.max(jnp.abs(y - y_ref)))

    # Validation run with a non-zero attention W so the full attention path is exercised.
    params_t = dict(params)
    params_t["ww"] = jax.random.normal(k_w, params["ww"].shape, jnp.float32) * 0.1
    params_t["bw"] = jnp.linspace(-0.5, 0.5, out_channels, dtype=jnp.float32)
    y_t = jax.block_until_ready(base_oc_context_forward(x, params_t))
    y_t_ref = reference_forward(x, params_t, key_channels)
    assert jnp.allclose(y_t, y_t_ref, atol=3e-2, rtol=3e-2), \
        float(jnp.max(jnp.abs(y_t - y_t_ref)))

    print("KERNEL_OK")
</pallas_src>

<mosaic_0001>
module attributes {stable_mosaic.version = 11 : i64} {
  func.func @_proj_kernel(%arg0: i32, %arg1: i32, %arg2: memref<1x256x128xbf16, #tpu.memory_space<vmem>>, %arg3: memref<128x128xbf16, #tpu.memory_space<vmem>>, %arg4: memref<1x128xf32, #tpu.memory_space<vmem>>, %arg5: memref<128x128xbf16, #tpu.memory_space<vmem>>, %arg6: memref<1x128xf32, #tpu.memory_space<vmem>>, %arg7: memref<1x256x128xbf16, #tpu.memory_space<vmem>>, %arg8: memref<1x256x128xbf16, #tpu.memory_space<vmem>>) attributes {dimension_semantics = [#tpu.dimension_semantics<parallel>, #tpu.dimension_semantics<parallel>], iteration_bounds = array<i64: 2, 1>, scalar_prefetch = 0 : i64, scratch_operands = 0 : i64, tpu.core_type = #tpu.core_type<tc>, window_params = [{transform_indices = @transform_0, window_bounds = array<i64: 1, 256, 128>}, {pipeline_mode = #tpu.pipeline_mode<synchronous>, transform_indices = @transform_1, window_bounds = array<i64: 128, 128>}, {pipeline_mode = #tpu.pipeline_mode<synchronous>, transform_indices = @transform_2, window_bounds = array<i64: 1, 128>}, {pipeline_mode = #tpu.pipeline_mode<synchronous>, transform_indices = @transform_3, window_bounds = array<i64: 128, 128>}, {pipeline_mode = #tpu.pipeline_mode<synchronous>, transform_indices = @transform_4, window_bounds = array<i64: 1, 128>}, {transform_indices = @transform_5, window_bounds = array<i64: 1, 256, 128>}, {transform_indices = @transform_6, window_bounds = array<i64: 1, 256, 128>}]} {
    %c0 = arith.constant 0 : index
    %c0_0 = arith.constant 0 : index
    %c0_1 = arith.constant 0 : index
    %0 = vector.load %arg2[%c0, %c0_0, %c0_1] : memref<1x256x128xbf16, #tpu.memory_space<vmem>>, vector<1x256x128xbf16>
    %1 = vector.shape_cast %0 : vector<1x256x128xbf16> to vector<256x128xbf16>
    %c0_2 = arith.constant 0 : index
    %c0_3 = arith.constant 0 : index
    %2 = vector.load %arg3[%c0_2, %c0_3] : memref<128x128xbf16, #tpu.memory_space<vmem>>, vector<128x128xbf16>
    %cst = arith.constant dense<0.000000e+00> : vector<256x128xf32>
    %3 = tpu.matmul %1, %2, %cst {dimension_numbers = #tpu.dot_dimension_numbers<[1], [0], [0], [1], [0, 0, 1, 1], [], []>} : vector<256x128xbf16>, vector<128x128xbf16>, vector<256x128xf32> -> vector<256x128xf32>
    %c0_4 = arith.constant 0 : index
    %c0_5 = arith.constant 0 : index
    %4 = vector.load %arg4[%c0_4, %c0_5] : memref<1x128xf32, #tpu.memory_space<vmem>>, vector<1x128xf32>
    %5 = vector.broadcast %4 : vector<1x128xf32> to vector<256x128xf32>
    %6 = arith.addf %3, %5 : vector<256x128xf32>
    %cst_6 = arith.constant 0.000000e+00 : f32
    %7 = vector.broadcast %cst_6 : f32 to vector<256x128xf32>
    %8 = arith.maximumf %6, %7 : vector<256x128xf32>
    %9 = arith.truncf %8 : vector<256x128xf32> to vector<256x128xbf16>
    %c0_7 = arith.constant 0 : index
    %c0_8 = arith.constant 0 : index
    %c0_9 = arith.constant 0 : index
    %10 = vector.load %arg7[%c0_7, %c0_8, %c0_9] : memref<1x256x128xbf16, #tpu.memory_space<vmem>>, vector<1x256x128xbf16>
    %11 = vector.shape_cast %10 : vector<1x256x128xbf16> to vector<256x128xbf16>
    %12 = vector.shape_cast %9 : vector<256x128xbf16> to vector<1x256x128xbf16>
    tpu.vector_store %arg7[%c0_7, %c0_8, %c0_9], %12 {strides = array<i32>} : memref<1x256x128xbf16, #tpu.memory_space<vmem>>, vector<1x256x128xbf16>,
    %c0_10 = arith.constant 0 : index
    %c0_11 = arith.constant 0 : index
    %13 = vector.load %arg5[%c0_10, %c0_11] : memref<128x128xbf16, #tpu.memory_space<vmem>>, vector<128x128xbf16>
    %cst_12 = arith.constant dense<0.000000e+00> : vector<256x128xf32>
    %14 = tpu.matmul %1, %13, %cst_12 {dimension_numbers = #tpu.dot_dimension_numbers<[1], [0], [0], [1], [0, 0, 1, 1], [], []>} : vector<256x128xbf16>, vector<128x128xbf16>, vector<256x128xf32> -> vector<256x128xf32>
    %c0_13 = arith.constant 0 : index
    %c0_14 = arith.constant 0 : index
    %15 = vector.load %arg6[%c0_13, %c0_14] : memref<1x128xf32, #tpu.memory_space<vmem>>, vector<1x128xf32>
    %16 = vector.broadcast %15 : vector<1x128xf32> to vector<256x128xf32>
    %17 = arith.addf %14, %16 : vector<256x128xf32>
    %18 = arith.truncf %17 : vector<256x128xf32> to vector<256x128xbf16>
    %c0_15 = arith.constant 0 : index
    %c0_16 = arith.constant 0 : index
    %c0_17 = arith.constant 0 : index
    %19 = vector.load %arg8[%c0_15, %c0_16, %c0_17] : memref<1x256x128xbf16, #tpu.memory_space<vmem>>, vector<1x256x128xbf16>
    %20 = vector.shape_cast %19 : vector<1x256x128xbf16> to vector<256x128xbf16>
    %21 = vector.shape_cast %18 : vector<256x128xbf16> to vector<1x256x128xbf16>
    tpu.vector_store %arg8[%c0_15, %c0_16, %c0_17], %21 {strides = array<i32>} : memref<1x256x128xbf16, #tpu.memory_space<vmem>>, vector<1x256x128xbf16>,
    return
  }
  func.func @transform_0(%arg0: i32, %arg1: i32) -> (i32, i32, i32) {
    %c0_i32 = arith.constant 0 : i32
    %c0_i32_0 = arith.constant 0 : i32
    return %arg0, %arg1, %c0_i32 : i32, i32, i32
  }
  func.func @transform_1(%arg0: i32, %arg1: i32) -> (i32, i32) {
    %c0_i32 = arith.constant 0 : i32
    %c0_i32_0 = arith.constant 0 : i32
    %c0_i32_1 = arith.constant 0 : i32
    return %c0_i32, %c0_i32_0 : i32, i32
  }
  func.func @transform_2(%arg0: i32, %arg1: i32) -> (i32, i32) {
    %c0_i32 = arith.constant 0 : i32
    %c0_i32_0 = arith.constant 0 : i32
    %c0_i32_1 = arith.constant 0 : i32
    return %c0_i32, %c0_i32_0 : i32, i32
  }
  func.func @transform_3(%arg0: i32, %arg1: i32) -> (i32, i32) {
    %c0_i32 = arith.constant 0 : i32
    %c0_i32_0 = arith.constant 0 : i32
    %c0_i32_1 = arith.constant 0 : i32
    return %c0_i32, %c0_i32_0 : i32, i32
  }
  func.func @transform_4(%arg0: i32, %arg1: i32) -> (i32, i32) {
    %c0_i32 = arith.constant 0 : i32
    %c0_i32_0 = arith.constant 0 : i32
    %c0_i32_1 = arith.constant 0 : i32
    return %c0_i32, %c0_i32_0 : i32, i32
  }
  func.func @transform_5(%arg0: i32, %arg1: i32) -> (i32, i32, i32) {
    %c0_i32 = arith.constant 0 : i32
    %c0_i32_0 = arith.constant 0 : i32
    return %arg0, %arg1, %c0_i32 : i32, i32, i32
  }
  func.func @transform_6(%arg0: i32, %arg1: i32) -> (i32, i32, i32) {
    %c0_i32 = arith.constant 0 : i32
    %c0_i32_0 = arith.constant 0 : i32
    return %arg0, %arg1, %c0_i32 : i32, i32, i32
  }
}

</mosaic_0001>

<llo_original>
// kernel: tpu_custom_call.1
$region0: #{tpu_custom_call.1}
  #allocation0 [shape = 'u32[]', space=smem, size = 0x4, offset = 0x4, fixed_abs, tag = 'smem constant byte address 0x4 - core index']
  #allocation1 [shape = 'u32[144,128]{1,0:T(1,128)}', space=vmem, size = 0x12000, scoped, tag = 'internal scratch']
  %s0 = inlined_call_operand.hbm [shape: bf16[2,256,128], index: 0, kind: input, shape index: {}]
  %s1 = inlined_call_operand.hbm [shape: bf16[128,128], index: 1, kind: input, shape index: {}]
  %s2 = inlined_call_operand.vmem [shape: f32[1,128], index: 2, kind: input, shape index: {}]
  %s3 = inlined_call_operand.hbm [shape: bf16[128,128], index: 3, kind: input, shape index: {}]
  %s4 = inlined_call_operand.vmem [shape: f32[1,128], index: 4, kind: input, shape index: {}]
  %s5 = inlined_call_operand.hbm [shape: bf16[2,256,128], index: 5, kind: output, shape index: {0}]
  %s6 = inlined_call_operand.hbm [shape: bf16[2,256,128], index: 6, kind: output, shape index: {1}]
  %7 = xla_tuple %s5, %s6
  %s8 = sld [smem:[#allocation0]]
  $region73: #{tpu_custom_call.1} parent=0
    _
  %s10 = ssub.s32 1, %s8
  %s11 = scalar_select 0, %s10, %s8
  $region1: #{tpu_custom_call.1} parent=0
    #allocation2 [shape = 'u8[131072]{0}', space=vmem, size = 0x20000, scoped, tag = 'input window, operand 0']
    #allocation3 [shape = 's32[2]{0}', space=sflag, size = 0x8, scoped, tag = 'scoped memory for tpu_custom_call.1']
    #allocation4 [shape = 's32[2]{0}', space=sflag, size = 0x8, scoped, tag = 'scoped memory for tpu_custom_call.1']
    #allocation5 [shape = 'u8[32768]{0}', space=vmem, size = 0x8000, scoped, tag = 'input window, operand 1, single buffered']
    #allocation6 [shape = 's32[1]{0}', space=sflag, size = 0x4, scoped, tag = 'scoped memory for tpu_custom_call.1']
    #allocation7 [shape = 'u8[32768]{0}', space=vmem, size = 0x8000, scoped, tag = 'input window, operand 3, single buffered']
    #allocation8 [shape = 'u8[131072]{0}', space=vmem, size = 0x20000, scoped, tag = 'output window, operand 0']
    #allocation9 [shape = 'u8[131072]{0}', space=vmem, size = 0x20000, scoped, tag = 'output window, operand 1']
    #allocation10 [shape = 's32[2]{0}', space=sflag, size = 0x8, scoped, tag = 'scoped memory for tpu_custom_call.1']
    %12 = vsyncpa [#allocation3], 0
    %s13 = scalar_lea.sflag [#allocation3], 1
    %14 = vsyncpa %s13, 0
    %15 = vsyncpa [#allocation6], 0
    %16 = vsyncpa [#allocation4], 0
    %s17 = scalar_lea.sflag [#allocation4], 1
    %18 = vsyncpa %s17, 0
    %19 = vsyncpa [#allocation10], 0
    %s20 = scalar_lea.sflag [#allocation10], 1
    %21 = vsyncpa %s20, 0
    loop: start=0, step=1, limit=4
    $region2: #{tpu_custom_call.1} parent=1 // loop_pre_header
      _
    $region3: #{tpu_custom_call.1} parent=1 // loop_header
      %s23 = sphi 0, %s27
      %p24 = scmp.ge.s32.totalorder %s23, 4
      %s30 = sphi 0, %s42
      %s31 = sphi 0, %s38
      %s32 = sphi 0, %s30
      %s33 = sphi 0, %s31
      %s34 = sphi 0, %s32
      %s35 = sphi 0, %s33
      %s47 = sphi 0, %s49
      %s50 = sphi 0, %s47
      %s51 = sphi 0, %s50
      %s67 = sphi 0, %s51
      %s71 = sphi 0, %s71
      %s73 = sphi 0, %s71
      %s74 = sphi 0, %s73
      %s88 = sphi 0, %s74
      %s92 = sphi 0, %s92
      %s94 = sphi 0, %s92
      %s95 = sphi 0, %s94
      %s109 = sphi 0, %s95
      %s113 = sphi 0, %s113
      %s115 = sphi 0, %s113
      %s116 = sphi 0, %s115
      %s130 = sphi 0, %s116
      %s134 = sphi 0, %s134
      %s136 = sphi 0, %s134
      %s137 = sphi 0, %s136
      %s151 = sphi 0, %s137
      %s159 = sphi 0, %s161
      %s162 = sphi 0, %s159
      %s163 = sphi 0, %s162
      %s179 = sphi 0, %s163
      %s187 = sphi 0, %s189
      %s190 = sphi 0, %s187
      %s191 = sphi 0, %s190
      %s207 = sphi 0, %s191
    $region4: #{tpu_custom_call.1} parent=1 // loop_header_branch
      %26 = sbr.rel (%p24) target = $region8
    $region5: #{tpu_custom_call.1} parent=1 // loop_body
      %s28 = ssub.s32 %s23, 1
      %s29 = ssub.s32 %s23, 2
      %s36 = sadd.s32 1, %s31
      %p37 = scmp.ge.s32.totalorder %s36, 1
      %s38 = scalar_select %p37, 0, %s36
      %s39 = sadd.s32 1, %s30
      %s40 = scalar_select %p37, %s39, %s30
      %p41 = scmp.ge.s32.totalorder %s40, 2
      %s42 = scalar_select %p41, 0, %s40
      %s43 = ssub.s32 %s30, %s42
      %s44 = ssub.s32 %s31, %s38
      %s45 = sor.u32 %s43, %s44
      %p46 = scmp.eq.s32.totalorder %s45, 0
      %s48 = sadd.s32 %s47, 1
      %s49 = scalar_select %p46, %s47, %s48
      %p52 = pneg %p46
      %p53 = scmp.eq.s32.totalorder %s23, 1
      %p54 = por %p52, %p53
      %p55 = scmp.ne.s32.totalorder %s47, %s50
      %p56 = scmp.eq.s32.totalorder %s23, 0
      %p57 = por %p55, %p56
      %p58 = scmp.ne.s32.totalorder %s47, %s50
      %p59 = scmp.eq.s32.totalorder %s28, 1
      %p60 = por %p58, %p59
      %p61 = scmp.ne.s32.totalorder %s50, %s51
      %p62 = scmp.eq.s32.totalorder %s28, 0
      %p63 = por %p61, %p62
      %p64 = scmp.ne.s32.totalorder %s50, %s51
      %p65 = scmp.eq.s32.totalorder %s29, 1
      %p66 = por %p64, %p65
      %p68 = scmp.ne.s32.totalorder %s51, %s67
      %p69 = scmp.eq.s32.totalorder %s29, 0
      %p70 = por %p68, %p69
      %s72 = sadd.s32 %s71, 1
      %p75 = scmp.eq.s32.totalorder %s23, 1
      %p76 = scmp.ne.s32.totalorder %s71, %s73
      %p77 = scmp.eq.s32.totalorder %s23, 0
      %p78 = por %p76, %p77
      %p79 = scmp.ne.s32.totalorder %s71, %s73
      %p80 = scmp.eq.s32.totalorder %s28, 1
      %p81 = por %p79, %p80
      %p82 = scmp.ne.s32.totalorder %s73, %s74
      %p83 = scmp.eq.s32.totalorder %s28, 0
      %p84 = por %p82, %p83
      %p85 = scmp.ne.s32.totalorder %s73, %s74
      %p86 = scmp.eq.s32.totalorder %s29, 1
      %p87 = por %p85, %p86
      %p89 = scmp.ne.s32.totalorder %s74, %s88
      %p90 = scmp.eq.s32.totalorder %s29, 0
      %p91 = por %p89, %p90
      %s93 = sadd.s32 %s92, 1
      %p96 = scmp.eq.s32.totalorder %s23, 1
      %p97 = scmp.ne.s32.totalorder %s92, %s94
      %p98 = scmp.eq.s32.totalorder %s23, 0
      %p99 = por %p97, %p98
      %p100 = scmp.ne.s32.totalorder %s92, %s94
      %p101 = scmp.eq.s32.totalorder %s28, 1
      %p102 = por %p100, %p101
      %p103 = scmp.ne.s32.totalorder %s94, %s95
      %p104 = scmp.eq.s32.totalorder %s28, 0
      %p105 = por %p103, %p104
      %p106 = scmp.ne.s32.totalorder %s94, %s95
      %p107 = scmp.eq.s32.totalorder %s29, 1
      %p108 = por %p106, %p107
      %p110 = scmp.ne.s32.totalorder %s95, %s109
      %p111 = scmp.eq.s32.totalorder %s29, 0
      %p112 = por %p110, %p111
      %s114 = sadd.s32 %s113, 1
      %p117 = scmp.eq.s32.totalorder %s23, 1
      %p118 = scmp.ne.s32.totalorder %s113, %s115
      %p119 = scmp.eq.s32.totalorder %s23, 0
      %p120 = por %p118, %p119
      %p121 = scmp.ne.s32.totalorder %s113, %s115
      %p122 = scmp.eq.s32.totalorder %s28, 1
      %p123 = por %p121, %p122
      %p124 = scmp.ne.s32.totalorder %s115, %s116
      %p125 = scmp.eq.s32.totalorder %s28, 0
      %p126 = por %p124, %p125
      %p127 = scmp.ne.s32.totalorder %s115, %s116
      %p128 = scmp.eq.s32.totalorder %s29, 1
      %p129 = por %p127, %p128
      %p131 = scmp.ne.s32.totalorder %s116, %s130
      %p132 = scmp.eq.s32.totalorder %s29, 0
      %p133 = por %p131, %p132
      %s135 = sadd.s32 %s134, 1
      %p138 = scmp.eq.s32.totalorder %s23, 1
      %p139 = scmp.ne.s32.totalorder %s134, %s136
      %p140 = scmp.eq.s32.totalorder %s23, 0
      %p141 = por %p139, %p140
      %p142 = scmp.ne.s32.totalorder %s134, %s136
      %p143 = scmp.eq.s32.totalorder %s28, 1
      %p144 = por %p142, %p143
      %p145 = scmp.ne.s32.totalorder %s136, %s137
      %p146 = scmp.eq.s32.totalorder %s28, 0
      %p147 = por %p145, %p146
      %p148 = scmp.ne.s32.totalorder %s136, %s137
      %p149 = scmp.eq.s32.totalorder %s29, 1
      %p150 = por %p148, %p149
      %p152 = scmp.ne.s32.totalorder %s137, %s151
      %p153 = scmp.eq.s32.totalorder %s29, 0
      %p154 = por %p152, %p153
      %s155 = ssub.s32 %s30, %s42
      %s156 = ssub.s32 %s31, %s38
      %s157 = sor.u32 %s155, %s156
      %p158 = scmp.eq.s32.totalorder %s157, 0
      %s160 = sadd.s32 %s159, 1
      %s161 = scalar_select %p158, %s159, %s160
      %p164 = pneg %p158
      %p165 = scmp.eq.s32.totalorder %s23, 1
      %p166 = por %p164, %p165
      %p167 = scmp.ne.s32.totalorder %s159, %s162
      %p168 = scmp.eq.s32.totalorder %s23, 0
      %p169 = por %p167, %p168
      %p170 = scmp.ne.s32.totalorder %s159, %s162
      %p171 = scmp.eq.s32.totalorder %s28, 1
      %p172 = por %p170, %p171
      %p173 = scmp.ne.s32.totalorder %s162, %s163
      %p174 = scmp.eq.s32.totalorder %s28, 0
      %p175 = por %p173, %p174
      %p176 = scmp.ne.s32.totalorder %s162, %s163
      %p177 = scmp.eq.s32.totalorder %s29, 1
      %p178 = por %p176, %p177
      %p180 = scmp.ne.s32.totalorder %s163, %s179
      %p181 = scmp.eq.s32.totalorder %s29, 0
      %p182 = por %p180, %p181
      %s183 = ssub.s32 %s30, %s42
      %s184 = ssub.s32 %s31, %s38
      %s185 = sor.u32 %s183, %s184
      %p186 = scmp.eq.s32.totalorder %s185, 0
      %s188 = sadd.s32 %s187, 1
      %s189 = scalar_select %p186, %s187, %s188
      %p192 = pneg %p186
      %p193 = scmp.eq.s32.totalorder %s23, 1
      %p194 = por %p192, %p193
      %p195 = scmp.ne.s32.totalorder %s187, %s190
      %p196 = scmp.eq.s32.totalorder %s23, 0
      %p197 = por %p195, %p196
      %p198 = scmp.ne.s32.totalorder %s187, %s190
      %p199 = scmp.eq.s32.totalorder %s28, 1
      %p200 = por %p198, %p199
      %p201 = scmp.ne.s32.totalorder %s190, %s191
      %p202 = scmp.eq.s32.totalorder %s28, 0
      %p203 = por %p201, %p202
      %p204 = scmp.ne.s32.totalorder %s190, %s191
      %p205 = scmp.eq.s32.totalorder %s29, 1
      %p206 = por %p204, %p205
      %p208 = scmp.ne.s32.totalorder %s191, %s207
      %p209 = scmp.eq.s32.totalorder %s29, 0
      %p210 = por %p208, %p209
      %p211 = scmp.le.s32.totalorder 1, %s23
      %p212 = scmp.lt.s32.totalorder %s23, 3
      %p213 = pnand %p211, %p212
      %p214 = pneg %p213
      // Predicated region
      $region9: #{tpu_custom_call.1} parent=5 // pred_check
        _
      $region10: #{tpu_custom_call.1} parent=5 // pred_check_branch
        %216 = sbr.rel (%p213) target = $region12
      $region11: #{tpu_custom_call.1} parent=5 // pred_region
        %s217 = ssub.s32 %s23, 1
        // Predicated region
        $region13: #{tpu_custom_call.1} parent=11 // pred_check
          %p218 = pneg %p84
        $region14: #{tpu_custom_call.1} parent=11 // pred_check_branch
          %220 = sbr.rel (%p218) target = $region16
        $region15: #{tpu_custom_call.1} parent=11 // pred_region
          %s222 = ssub.s32 1024, 1024
          %223 = vsyncadd [#allocation6], %s222
          %s224 = sshll.u32 [#allocation5], 4
          %s225 = int_to_ptr.vmem [resolvable:$true] %s224
          %230 = dma.hbm_to_vmem [thread:$0]  %s1, 1024, %s225, [#allocation6], 64, 64, 4
        $region16: #{tpu_custom_call.1} parent=11 // pred_fallthru
          _
        // Predicated region
        $region17: #{tpu_custom_call.1} parent=11 // pred_check
          %p231 = pneg %p105
        $region18: #{tpu_custom_call.1} parent=11 // pred_check_branch
          %233 = sbr.rel (%p231) target = $region20
        $region19: #{tpu_custom_call.1} parent=11 // pred_region
          _
        $region20: #{tpu_custom_call.1} parent=11 // pred_fallthru
          _
        // Predicated region
        $region21: #{tpu_custom_call.1} parent=11 // pred_check
          %p234 = pneg %p126
        $region22: #{tpu_custom_call.1} parent=11 // pred_check_branch
          %236 = sbr.rel (%p234) target = $region24
        $region23: #{tpu_custom_call.1} parent=11 // pred_region
          %s238 = ssub.s32 1024, 1024
          %239 = vsyncadd [#allocation6], %s238
          %s240 = sshll.u32 [#allocation7], 4
          %s241 = int_to_ptr.vmem [resolvable:$true] %s240
          %246 = dma.hbm_to_vmem [thread:$0]  %s3, 1024, %s241, [#allocation6], 64, 64, 4
        $region24: #{tpu_custom_call.1} parent=11 // pred_fallthru
          _
        // Predicated region
        $region25: #{tpu_custom_call.1} parent=11 // pred_check
          %p247 = pneg %p147
        $region26: #{tpu_custom_call.1} parent=11 // pred_check_branch
          %249 = sbr.rel (%p247) target = $region28
        $region27: #{tpu_custom_call.1} parent=11 // pred_region
          _
        $region28: #{tpu_custom_call.1} parent=11 // pred_fallthru
          _
      $region12: #{tpu_custom_call.1} parent=5 // pred_fallthru
        _
      %p250 = scmp.lt.s32.totalorder %s23, 2
      // Predicated region
      $region29: #{tpu_custom_call.1} parent=5 // pred_check
        %p251 = pneg %p250
      $region30: #{tpu_custom_call.1} parent=5 // pred_check_branch
        %253 = sbr.rel (%p251) target = $region32
      $region31: #{tpu_custom_call.1} parent=5 // pred_region
        // Predicated region
        $region33: #{tpu_custom_call.1} parent=31 // pred_check
          %p254 = pneg %p57
        $region34: #{tpu_custom_call.1} parent=31 // pred_check_branch
          %256 = sbr.rel (%p254) target = $region36
        $region35: #{tpu_custom_call.1} parent=31 // pred_region
          %s257 = sand.u32 %s47, 1
          %s258 = scalar_lea.sflag [#allocation3], %s257
          %s259 = sand.u32 %s47, 1
          %s260 = smul.addr %s259, 128
          %s261 = scalar_lea.vmem [#allocation2], %s260
          %s262 = smul.u32 32, %s31
          %s264 = ssub.s32 2048, 2048
          %265 = vsyncadd %s258, %s264
          %s266 = smul.addr %s30, 32
          %s267 = sadd.s32 %s262, %s266
          %s268 = smul.addr %s267, 64
          %s269 = scalar_lea.hbm %s0, %s268
          %s270 = sshll.u32 %s261, 4
          %s271 = int_to_ptr.vmem [resolvable:$true] %s270
          %276 = dma.hbm_to_vmem [thread:$0]  %s269, 2048, %s271, %s258, 64, 64, 4
        $region36: #{tpu_custom_call.1} parent=31 // pred_fallthru
          _
      $region32: #{tpu_custom_call.1} parent=5 // pred_fallthru
        _
      %p277 = scmp.le.s32.totalorder 1, %s23
      %p278 = scmp.lt.s32.totalorder %s23, 3
      %p279 = pnand %p277, %p278
      %p280 = pneg %p279
      // Predicated region
      $region37: #{tpu_custom_call.1} parent=5 // pred_check
        _
      $region38: #{tpu_custom_call.1} parent=5 // pred_check_branch
        %282 = sbr.rel (%p279) target = $region40
      $region39: #{tpu_custom_call.1} parent=5 // pred_region
        %s283 = ssub.s32 %s23, 1
        %s284 = sand.u32 %s50, 1
        %s285 = scalar_lea.sflag [#allocation3], %s284
        %s286 = sand.u32 %s50, 1
        %s287 = smul.addr %s286, 128
        %s288 = scalar_lea.vmem [#allocation2], %s287
        // Predicated region
        $region41: #{tpu_custom_call.1} parent=39 // pred_check
          %p289 = pneg %p63
        $region42: #{tpu_custom_call.1} parent=39 // pred_check_branch
          %291 = sbr.rel (%p289) target = $region44
        $region43: #{tpu_custom_call.1} parent=39 // pred_region
          %292 = dma.done %s285, 2048
        $region44: #{tpu_custom_call.1} parent=39 // pred_fallthru
          _
        // Predicated region
        $region45: #{tpu_custom_call.1} parent=39 // pred_check
          %p293 = pneg %p84
        $region46: #{tpu_custom_call.1} parent=39 // pred_check_branch
          %295 = sbr.rel (%p293) target = $region48
        $region47: #{tpu_custom_call.1} parent=39 // pred_region
          %296 = dma.done [#allocation6], 1024
        $region48: #{tpu_custom_call.1} parent=39 // pred_fallthru
          _
        // Predicated region
        $region49: #{tpu_custom_call.1} parent=39 // pred_check
          %p297 = pneg %p126
        $region50: #{tpu_custom_call.1} parent=39 // pred_check_branch
          %299 = sbr.rel (%p297) target = $region52
        $region51: #{tpu_custom_call.1} parent=39 // pred_region
          %300 = dma.done [#allocation6], 1024
        $region52: #{tpu_custom_call.1} parent=39 // pred_fallthru
          _
        %s301 = sand.u32 %s50, 1
        %s302 = scalar_lea.sflag [#allocation3], %s301
        %s303 = sand.u32 %s50, 1
        %s304 = smul.addr %s303, 128
        %s305 = scalar_lea.vmem [#allocation2], %s304
        %p306 = pneg %p63
        %p307 = pneg %p60
        %p308 = pneg %p84
        %p309 = pneg %p81
        %p310 = pneg %p105
        %p311 = pneg %p102
        %p312 = pneg %p126
        %p313 = pneg %p123
        %p314 = pneg %p147
        %p315 = pneg %p144
        %p316 = pneg %p175
        %p317 = pneg %p172
        %s318 = sand.u32 %s162, 1
        %s319 = scalar_lea.sflag [#allocation4], %s318
        %s320 = sand.u32 %s162, 1
        %s321 = smul.addr %s320, 128
        %s322 = scalar_lea.vmem [#allocation8], %s321
        %p323 = pneg %p203
        %p324 = pneg %p200
        %s325 = sand.u32 %s190, 1
        %s326 = scalar_lea.sflag [#allocation10], %s325
        %s327 = sand.u32 %s190, 1
        %s328 = smul.addr %s327, 128
        %s329 = scalar_lea.vmem [#allocation9], %s328
        %s330 = smul.u32 32, %s33
        %s331 = smul.u32 32, %s33
        %s332 = smul.u32 32, %s33
        %v334 = vld [vmem:[%s288] sm:$0xf]
        %v335 = vld [vmem:[%s288 + $0x4] sm:$0xf]
        %v336 = vld [vmem:[%s288 + $0x8] sm:$0xf]
        %v337 = vld [vmem:[%s288 + $0xc] sm:$0xf]
        %v338 = vld [vmem:[%s288 + $0x10] sm:$0xf]
        %v339 = vld [vmem:[%s288 + $0x14] sm:$0xf]
        %v340 = vld [vmem:[%s288 + $0x18] sm:$0xf]
        %v341 = vld [vmem:[%s288 + $0x1c] sm:$0xf]
        %v342 = vld [vmem:[%s288 + $0x20] sm:$0xf]
        %v343 = vld [vmem:[%s288 + $0x24] sm:$0xf]
        %v344 = vld [vmem:[%s288 + $0x28] sm:$0xf]
        %v345 = vld [vmem:[%s288 + $0x2c] sm:$0xf]
        %v346 = vld [vmem:[%s288 + $0x30] sm:$0xf]
        %v347 = vld [vmem:[%s288 + $0x34] sm:$0xf]
        %v348 = vld [vmem:[%s288 + $0x38] sm:$0xf]
        %v349 = vld [vmem:[%s288 + $0x3c] sm:$0xf]
        %v350 = vld [vmem:[%s288 + $0x40] sm:$0xf]
        %v351 = vld [vmem:[%s288 + $0x44] sm:$0xf]
        %v352 = vld [vmem:[%s288 + $0x48] sm:$0xf]
        %v353 = vld [vmem:[%s288 + $0x4c] sm:$0xf]
        %v354 = vld [vmem:[%s288 + $0x50] sm:$0xf]
        %v355 = vld [vmem:[%s288 + $0x54] sm:$0xf]
        %v356 = vld [vmem:[%s288 + $0x58] sm:$0xf]
        %v357 = vld [vmem:[%s288 + $0x5c] sm:$0xf]
        %v358 = vld [vmem:[%s288 + $0x60] sm:$0xf]
        %v359 = vld [vmem:[%s288 + $0x64] sm:$0xf]
        %v360 = vld [vmem:[%s288 + $0x68] sm:$0xf]
        %v361 = vld [vmem:[%s288 + $0x6c] sm:$0xf]
        %v362 = vld [vmem:[%s288 + $0x70] sm:$0xf]
        %v363 = vld [vmem:[%s288 + $0x74] sm:$0xf]
        %v364 = vld [vmem:[%s288 + $0x78] sm:$0xf]
        %v365 = vld [vmem:[%s288 + $0x7c] sm:$0xf]
        %v366 = vld [vmem:[#allocation5] sm:$0xf]
        %v367 = vld [vmem:[#allocation5 + $0x4] sm:$0xf]
        %v368 = vld [vmem:[#allocation5 + $0x8] sm:$0xf]
        %v369 = vld [vmem:[#allocation5 + $0xc] sm:$0xf]
        %v370 = vld [vmem:[#allocation5 + $0x10] sm:$0xf]
        %v371 = vld [vmem:[#allocation5 + $0x14] sm:$0xf]
        %v372 = vld [vmem:[#allocation5 + $0x18] sm:$0xf]
        %v373 = vld [vmem:[#allocation5 + $0x1c] sm:$0xf]
        %v374 = vld [vmem:[#allocation5 + $0x20] sm:$0xf]
        %v375 = vld [vmem:[#allocation5 + $0x24] sm:$0xf]
        %v376 = vld [vmem:[#allocation5 + $0x28] sm:$0xf]
        %v377 = vld [vmem:[#allocation5 + $0x2c] sm:$0xf]
        %v378 = vld [vmem:[#allocation5 + $0x30] sm:$0xf]
        %v379 = vld [vmem:[#allocation5 + $0x34] sm:$0xf]
        %v380 = vld [vmem:[#allocation5 + $0x38] sm:$0xf]
        %v381 = vld [vmem:[#allocation5 + $0x3c] sm:$0xf]
        %v382 = vld [vmem:[%s2] sm:$0x1]
        %v384 = vlaneseq
        %v385 = vshrl.u32 %v384, 7
        %v386 = vsub.s32 0, %v385
        %v387 = vrot.slane %v382, %v386
        %v421 = vunpack.c.l.b16 %v334
        %v422 = vunpack.c.l.b16 %v335
        %v423 = vunpack.c.l.b16 %v336
        %v424 = vunpack.c.l.b16 %v337
        %v425 = vunpack.c.l.b16 %v338
        %v426 = vunpack.c.l.b16 %v339
        %v427 = vunpack.c.l.b16 %v340
        %v428 = vunpack.c.l.b16 %v341
        %v429 = vunpack.c.l.b16 %v342
        %v430 = vunpack.c.l.b16 %v343
        %v431 = vunpack.c.l.b16 %v344
        %v432 = vunpack.c.l.b16 %v345
        %v433 = vunpack.c.l.b16 %v346
        %v434 = vunpack.c.l.b16 %v347
        %v435 = vunpack.c.l.b16 %v348
        %v436 = vunpack.c.l.b16 %v349
        %v437 = vunpack.c.l.b16 %v350
        %v438 = vunpack.c.l.b16 %v351
        %v439 = vunpack.c.l.b16 %v352
        %v440 = vunpack.c.l.b16 %v353
        %v441 = vunpack.c.l.b16 %v354
        %v442 = vunpack.c.l.b16 %v355
        %v443 = vunpack.c.l.b16 %v356
        %v444 = vunpack.c.l.b16 %v357
        %v445 = vunpack.c.l.b16 %v358
        %v446 = vunpack.c.l.b16 %v359
        %v447 = vunpack.c.l.b16 %v360
        %v448 = vunpack.c.l.b16 %v361
        %v449 = vunpack.c.l.b16 %v362
        %v450 = vunpack.c.l.b16 %v363
        %v451 = vunpack.c.l.b16 %v364
        %v452 = vunpack.c.l.b16 %v365
        %v453 = vpack.c.b16 %v422, %v421
        %v454 = vpack.c.b16 %v424, %v423
        %v455 = vpack.c.b16 %v426, %v425
        %v456 = vpack.c.b16 %v428, %v427
        %v457 = vpack.c.b16 %v430, %v429
        %v458 = vpack.c.b16 %v432, %v431
        %v459 = vpack.c.b16 %v434, %v433
        %v460 = vpack.c.b16 %v436, %v435
        %v461 = vpack.c.b16 %v438, %v437
        %v462 = vpack.c.b16 %v440, %v439
        %v463 = vpack.c.b16 %v442, %v441
        %v464 = vpack.c.b16 %v444, %v443
        %v465 = vpack.c.b16 %v446, %v445
        %v466 = vpack.c.b16 %v448, %v447
        %v467 = vpack.c.b16 %v450, %v449
        %v468 = vpack.c.b16 %v452, %v451
        %v501 = vunpack.c.l.b16 %v366
        %v502 = vunpack.c.l.b16 %v367
        %v503 = vunpack.c.l.b16 %v368
        %v504 = vunpack.c.l.b16 %v369
        %v505 = vunpack.c.l.b16 %v370
        %v506 = vunpack.c.l.b16 %v371
        %v507 = vunpack.c.l.b16 %v372
        %v508 = vunpack.c.l.b16 %v373
        %v509 = vunpack.c.l.b16 %v374
        %v510 = vunpack.c.l.b16 %v375
        %v511 = vunpack.c.l.b16 %v376
        %v512 = vunpack.c.l.b16 %v377
        %v513 = vunpack.c.l.b16 %v378
        %v514 = vunpack.c.l.b16 %v379
        %v515 = vunpack.c.l.b16 %v380
        %v516 = vunpack.c.l.b16 %v381
        %v517 = vpack.c.b16 %v502, %v501
        %v518 = vpack.c.b16 %v504, %v503
        %v519 = vpack.c.b16 %v506, %v505
        %v520 = vpack.c.b16 %v508, %v507
        %v521 = vpack.c.b16 %v510, %v509
        %v522 = vpack.c.b16 %v512, %v511
        %v523 = vpack.c.b16 %v514, %v513
        %v524 = vpack.c.b16 %v516, %v515
        %533 = vmatprep.subr.bf16.mxu0 0
        %534 = vmatpush1.bf16.msra.mxu0 %v517
        %535 = vmatprep.subr.bf16.mxu0 0
        %536 = vmatpush1.bf16.msra.mxu0 %v518
        %537 = vmatprep.subr.bf16.mxu0 0
        %538 = vmatpush1.bf16.msra.mxu0 %v519
        %539 = vmatprep.subr.bf16.mxu0 0
        %540 = vmatpush1.bf16.msra.mxu0 %v520
        %541 = vmatprep.subr.bf16.mxu0 0
        %542 = vmatpush1.bf16.msra.mxu0 %v521
        %543 = vmatprep.subr.bf16.mxu0 0
        %544 = vmatpush1.bf16.msra.mxu0 %v522
        %545 = vmatprep.subr.bf16.mxu0 0
        %546 = vmatpush1.bf16.msra.mxu0 %v523
        %547 = vmatprep.subr.bf16.mxu0 0
        %548 = vmatpush1.bf16.msra.mxu0 %v524
        %549 = vmatprep.subr.bf16.mxu0 0
        %550 = vmatpush1.bf16.msra.mxu0 0
        %551 = vmatprep.subr.bf16.mxu0 0
        %552 = vmatpush1.bf16.msra.mxu0 0
        %553 = vmatprep.subr.bf16.mxu0 0
        %554 = vmatpush1.bf16.msra.mxu0 0
        %555 = vmatprep.subr.bf16.mxu0 0
        %556 = vmatpush1.bf16.msra.mxu0 0
        %557 = vmatprep.subr.bf16.mxu0 0
        %558 = vmatpush1.bf16.msra.mxu0 0
        %559 = vmatprep.subr.bf16.mxu0 0
        %560 = vmatpush1.bf16.msra.mxu0 0
        %561 = vmatprep.subr.bf16.mxu0 0
        %562 = vmatpush1.bf16.msra.mxu0 0
        %563 = vmatprep.subr.bf16.mxu0 0
        %564 = vmatpush1.bf16.msra.mxu0 0
        %565 = vmatprep.mubr.bf16.mxu0 0
        %566 = vmatmul.mubr.bf16.gmra.mrb[0].mxu0 %v453
        %v567 = vpop.f32.mrb[0].mxu0
        %v568 = vadd.f32 %v387, %v567
        %v569 = vpop.f32.mrb[0].mxu0
        %v570 = vpop.f32.mrb[0].mxu0
        %v571 = vadd.f32 %v387, %v570
        %v572 = vpop.f32.mrb[0].mxu0
        %573 = vmatprep.mubr.bf16.mxu0 0
        %574 = vmatmul.mubr.bf16.gmra.mrb[0].mxu0 %v454
        %v575 = vpop.f32.mrb[0].mxu0
        %v576 = vadd.f32 %v387, %v575
        %v577 = vpop.f32.mrb[0].mxu0
        %v578 = vpop.f32.mrb[0].mxu0
        %v579 = vadd.f32 %v387, %v578
        %v580 = vpop.f32.mrb[0].mxu0
        %581 = vmatprep.mubr.bf16.mxu0 0
        %582 = vmatmul.mubr.bf16.gmra.mrb[0].mxu0 %v455
        %v583 = vpop.f32.mrb[0].mxu0
        %v584 = vadd.f32 %v387, %v583
        %v585 = vpop.f32.mrb[0].mxu0
        %v586 = vpop.f32.mrb[0].mxu0
        %v587 = vadd.f32 %v387, %v586
        %v588 = vpop.f32.mrb[0].mxu0
        %589 = vmatprep.mubr.bf16.mxu0 0
        %590 = vmatmul.mubr.bf16.gmra.mrb[0].mxu0 %v456
        %v591 = vpop.f32.mrb[0].mxu0
        %v592 = vadd.f32 %v387, %v591
        %v593 = vpop.f32.mrb[0].mxu0
        %v594 = vpop.f32.mrb[0].mxu0
        %v595 = vadd.f32 %v387, %v594
        %v596 = vpop.f32.mrb[0].mxu0
        %597 = vmatprep.mubr.bf16.mxu0 0
        %598 = vmatmul.mubr.bf16.gmra.mrb[0].mxu0 %v457
        %v599 = vpop.f32.mrb[0].mxu0
        %v600 = vadd.f32 %v387, %v599
        %v601 = vpop.f32.mrb[0].mxu0
        %v602 = vpop.f32.mrb[0].mxu0
        %v603 = vadd.f32 %v387, %v602
        %v604 = vpop.f32.mrb[0].mxu0
        %605 = vmatprep.mubr.bf16.mxu0 0
        %606 = vmatmul.mubr.bf16.gmra.mrb[0].mxu0 %v458
        %v607 = vpop.f32.mrb[0].mxu0
        %v608 = vadd.f32 %v387, %v607
        %v609 = vpop.f32.mrb[0].mxu0
        %v610 = vpop.f32.mrb[0].mxu0
        %v611 = vadd.f32 %v387, %v610
        %v612 = vpop.f32.mrb[0].mxu0
        %613 = vmatprep.mubr.bf16.mxu0 0
        %614 = vmatmul.mubr.bf16.gmra.mrb[0].mxu0 %v459
        %v615 = vpop.f32.mrb[0].mxu0
        %v616 = vadd.f32 %v387, %v615
        %v617 = vpop.f32.mrb[0].mxu0
        %v618 = vpop.f32.mrb[0].mxu0
        %v619 = vadd.f32 %v387, %v618
        %v620 = vpop.f32.mrb[0].mxu0
        %621 = vmatprep.mubr.bf16.mxu0 0
        %622 = vmatmul.mubr.bf16.gmra.mrb[0].mxu0 %v460
        %v623 = vpop.f32.mrb[0].mxu0
        %v624 = vadd.f32 %v387, %v623
        %v625 = vpop.f32.mrb[0].mxu0
        %v626 = vpop.f32.mrb[0].mxu0
        %v627 = vadd.f32 %v387, %v626
        %v628 = vpop.f32.mrb[0].mxu0
        %629 = vmatprep.mubr.bf16.mxu0 0
        %630 = vmatmul.mubr.bf16.gmra.mrb[0].mxu0 %v461
        %v631 = vpop.f32.mrb[0].mxu0
        %v632 = vadd.f32 %v387, %v631
        %v633 = vpop.f32.mrb[0].mxu0
        %v634 = vpop.f32.mrb[0].mxu0
        %v635 = vadd.f32 %v387, %v634
        %v636 = vpop.f32.mrb[0].mxu0
        %637 = vmatprep.mubr.bf16.mxu0 0
        %638 = vmatmul.mubr.bf16.gmra.mrb[0].mxu0 %v462
        %v639 = vpop.f32.mrb[0].mxu0
        %v640 = vadd.f32 %v387, %v639
        %v641 = vpop.f32.mrb[0].mxu0
        %v642 = vpop.f32.mrb[0].mxu0
        %v643 = vadd.f32 %v387, %v642
        %v644 = vpop.f32.mrb[0].mxu0
        %645 = vmatprep.mubr.bf16.mxu0 0
        %646 = vmatmul.mubr.bf16.gmra.mrb[0].mxu0 %v463
        %v647 = vpop.f32.mrb[0].mxu0
        %v648 = vadd.f32 %v387, %v647
        %v649 = vpop.f32.mrb[0].mxu0
        %v650 = vpop.f32.mrb[0].mxu0
        %v651 = vadd.f32 %v387, %v650
        %v652 = vpop.f32.mrb[0].mxu0
        %653 = vmatprep.mubr.bf16.mxu0 0
        %654 = vmatmul.mubr.bf16.gmra.mrb[0].mxu0 %v464
        %v655 = vpop.f32.mrb[0].mxu0
        %v656 = vadd.f32 %v387, %v655
        %v657 = vpop.f32.mrb[0].mxu0
        %v658 = vpop.f32.mrb[0].mxu0
        %v659 = vadd.f32 %v387, %v658
        %v660 = vpop.f32.mrb[0].mxu0
        %661 = vmatprep.mubr.bf16.mxu0 0
        %662 = vmatmul.mubr.bf16.gmra.mrb[0].mxu0 %v465
        %v663 = vpop.f32.mrb[0].mxu0
        %v664 = vadd.f32 %v387, %v663
        %v665 = vpop.f32.mrb[0].mxu0
        %v666 = vpop.f32.mrb[0].mxu0
        %v667 = vadd.f32 %v387, %v666
        %v668 = vpop.f32.mrb[0].mxu0
        %669 = vmatprep.mubr.bf16.mxu0 0
        %670 = vmatmul.mubr.bf16.gmra.mrb[0].mxu0 %v466
        %v671 = vpop.f32.mrb[0].mxu0
        %v672 = vadd.f32 %v387, %v671
        %v673 = vpop.f32.mrb[0].mxu0
        %v674 = vpop.f32.mrb[0].mxu0
        %v675 = vadd.f32 %v387, %v674
        %v676 = vpop.f32.mrb[0].mxu0
        %677 = vmatprep.mubr.bf16.mxu0 0
        %678 = vmatmul.mubr.bf16.gmra.mrb[0].mxu0 %v467
        %v679 = vpop.f32.mrb[0].mxu0
        %v680 = vadd.f32 %v387, %v679
        %v681 = vpop.f32.mrb[0].mxu0
        %v682 = vpop.f32.mrb[0].mxu0
        %v683 = vadd.f32 %v387, %v682
        %v684 = vpop.f32.mrb[0].mxu0
        %685 = vmatprep.mubr.bf16.mxu0 0
        %686 = vmatmul.mubr.bf16.gmra.mrb[0].mxu0 %v468
        %v687 = vpop.f32.mrb[0].mxu0
        %v688 = vadd.f32 %v387, %v687
        %v689 = vpop.f32.mrb[0].mxu0
        %v690 = vpop.f32.mrb[0].mxu0
        %v691 = vadd.f32 %v387, %v690
        %v692 = vpop.f32.mrb[0].mxu0
        %693 = vdwg.mxu0
        %v694 = vmax.f32 %v568, 0.0
        %v695 = vmax.f32 %v571, 0.0
        %v696 = vmax.f32 %v576, 0.0
        %v697 = vmax.f32 %v579, 0.0
        %v698 = vmax.f32 %v584, 0.0
        %v699 = vmax.f32 %v587, 0.0
        %v700 = vmax.f32 %v592, 0.0
        %v701 = vmax.f32 %v595, 0.0
        %v702 = vmax.f32 %v600, 0.0
        %v703 = vmax.f32 %v603, 0.0
        %v704 = vmax.f32 %v608, 0.0
        %v705 = vmax.f32 %v611, 0.0
        %v706 = vmax.f32 %v616, 0.0
        %v707 = vmax.f32 %v619, 0.0
        %v708 = vmax.f32 %v624, 0.0
        %v709 = vmax.f32 %v627, 0.0
        %v710 = vmax.f32 %v632, 0.0
        %v711 = vmax.f32 %v635, 0.0
        %v712 = vmax.f32 %v640, 0.0
        %v713 = vmax.f32 %v643, 0.0
        %v714 = vmax.f32 %v648, 0.0
        %v715 = vmax.f32 %v651, 0.0
        %v716 = vmax.f32 %v656, 0.0
        %v717 = vmax.f32 %v659, 0.0
        %v718 = vmax.f32 %v664, 0.0
        %v719 = vmax.f32 %v667, 0.0
        %v720 = vmax.f32 %v672, 0.0
        %v721 = vmax.f32 %v675, 0.0
        %v722 = vmax.f32 %v680, 0.0
        %v723 = vmax.f32 %v683, 0.0
        %v724 = vmax.f32 %v688, 0.0
        %v725 = vmax.f32 %v691, 0.0
        %v726 = vpack.c.bf16 %v695, %v694
        %v727 = vpack.c.bf16 %v697, %v696
        %v728 = vpack.c.bf16 %v699, %v698
        %v729 = vpack.c.bf16 %v701, %v700
        %v730 = vpack.c.bf16 %v703, %v702
        %v731 = vpack.c.bf16 %v705, %v704
        %v732 = vpack.c.bf16 %v707, %v706
        %v733 = vpack.c.bf16 %v709, %v708
        %v734 = vpack.c.bf16 %v711, %v710
        %v735 = vpack.c.bf16 %v713, %v712
        %v736 = vpack.c.bf16 %v715, %v714
        %v737 = vpack.c.bf16 %v717, %v716
        %v738 = vpack.c.bf16 %v719, %v718
        %v739 = vpack.c.bf16 %v721, %v720
        %v740 = vpack.c.bf16 %v723, %v722
        %v741 = vpack.c.bf16 %v725, %v724
        %v758 = vunpack.c.l.b16 %v726
        %v759 = vunpack.c.h.b16 %v726
        %v760 = vunpack.c.l.b16 %v727
        %v761 = vunpack.c.h.b16 %v727
        %v762 = vunpack.c.l.b16 %v728
        %v763 = vunpack.c.h.b16 %v728
        %v764 = vunpack.c.l.b16 %v729
        %v765 = vunpack.c.h.b16 %v729
        %v766 = vunpack.c.l.b16 %v730
        %v767 = vunpack.c.h.b16 %v730
        %v768 = vunpack.c.l.b16 %v731
        %v769 = vunpack.c.h.b16 %v731
        %v770 = vunpack.c.l.b16 %v732
        %v771 = vunpack.c.h.b16 %v732
        %v772 = vunpack.c.l.b16 %v733
        %v773 = vunpack.c.h.b16 %v733
        %v774 = vunpack.c.l.b16 %v734
        %v775 = vunpack.c.h.b16 %v734
        %v776 = vunpack.c.l.b16 %v735
        %v777 = vunpack.c.h.b16 %v735
        %v778 = vunpack.c.l.b16 %v736
        %v779 = vunpack.c.h.b16 %v736
        %v780 = vunpack.c.l.b16 %v737
        %v781 = vunpack.c.h.b16 %v737
        %v782 = vunpack.c.l.b16 %v738
        %v783 = vunpack.c.h.b16 %v738
        %v784 = vunpack.c.l.b16 %v739
        %v785 = vunpack.c.h.b16 %v739
        %v786 = vunpack.c.l.b16 %v740
        %v787 = vunpack.c.h.b16 %v740
        %v788 = vunpack.c.l.b16 %v741
        %v789 = vunpack.c.h.b16 %v741
        %v790 = vpack.c.b16 %v758, %v758
        %v791 = vpack.c.b16 %v759, %v759
        %v792 = vpack.c.b16 %v760, %v760
        %v793 = vpack.c.b16 %v761, %v761
        %v794 = vpack.c.b16 %v762, %v762
        %v795 = vpack.c.b16 %v763, %v763
        %v796 = vpack.c.b16 %v764, %v764
        %v797 = vpack.c.b16 %v765, %v765
        %v798 = vpack.c.b16 %v766, %v766
        %v799 = vpack.c.b16 %v767, %v767
        %v800 = vpack.c.b16 %v768, %v768
        %v801 = vpack.c.b16 %v769, %v769
        %v802 = vpack.c.b16 %v770, %v770
        %v803 = vpack.c.b16 %v771, %v771
        %v804 = vpack.c.b16 %v772, %v772
        %v805 = vpack.c.b16 %v773, %v773
        %v806 = vpack.c.b16 %v774, %v774
        %v807 = vpack.c.b16 %v775, %v775
        %v808 = vpack.c.b16 %v776, %v776
        %v809 = vpack.c.b16 %v777, %v777
        %v810 = vpack.c.b16 %v778, %v778
        %v811 = vpack.c.b16 %v779, %v779
        %v812 = vpack.c.b16 %v780, %v780
        %v813 = vpack.c.b16 %v781, %v781
        %v814 = vpack.c.b16 %v782, %v782
        %v815 = vpack.c.b16 %v783, %v783
        %v816 = vpack.c.b16 %v784, %v784
        %v817 = vpack.c.b16 %v785, %v785
        %v818 = vpack.c.b16 %v786, %v786
        %v819 = vpack.c.b16 %v787, %v787
        %v820 = vpack.c.b16 %v788, %v788
        %v821 = vpack.c.b16 %v789, %v789
        %854 = vst [vmem:[%s322] sm:$0xf] %v790
        %855 = vst [vmem:[%s322 + $0x4] sm:$0xf] %v791
        %856 = vst [vmem:[%s322 + $0x8] sm:$0xf] %v792
        %857 = vst [vmem:[%s322 + $0xc] sm:$0xf] %v793
        %858 = vst [vmem:[%s322 + $0x10] sm:$0xf] %v794
        %859 = vst [vmem:[%s322 + $0x14] sm:$0xf] %v795
        %860 = vst [vmem:[%s322 + $0x18] sm:$0xf] %v796
        %861 = vst [vmem:[%s322 + $0x1c] sm:$0xf] %v797
        %862 = vst [vmem:[%s322 + $0x20] sm:$0xf] %v798
        %863 = vst [vmem:[%s322 + $0x24] sm:$0xf] %v799
        %864 = vst [vmem:[%s322 + $0x28] sm:$0xf] %v800
        %865 = vst [vmem:[%s322 + $0x2c] sm:$0xf] %v801
        %866 = vst [vmem:[%s322 + $0x30] sm:$0xf] %v802
        %867 = vst [vmem:[%s322 + $0x34] sm:$0xf] %v803
        %868 = vst [vmem:[%s322 + $0x38] sm:$0xf] %v804
        %869 = vst [vmem:[%s322 + $0x3c] sm:$0xf] %v805
        %870 = vst [vmem:[%s322 + $0x40] sm:$0xf] %v806
        %871 = vst [vmem:[%s322 + $0x44] sm:$0xf] %v807
        %872 = vst [vmem:[%s322 + $0x48] sm:$0xf] %v808
        %873 = vst [vmem:[%s322 + $0x4c] sm:$0xf] %v809
        %874 = vst [vmem:[%s322 + $0x50] sm:$0xf] %v810
        %875 = vst [vmem:[%s322 + $0x54] sm:$0xf] %v811
        %876 = vst [vmem:[%s322 + $0x58] sm:$0xf] %v812
        %877 = vst [vmem:[%s322 + $0x5c] sm:$0xf] %v813
        %878 = vst [vmem:[%s322 + $0x60] sm:$0xf] %v814
        %879 = vst [vmem:[%s322 + $0x64] sm:$0xf] %v815
        %880 = vst [vmem:[%s322 + $0x68] sm:$0xf] %v816
        %881 = vst [vmem:[%s322 + $0x6c] sm:$0xf] %v817
        %882 = vst [vmem:[%s322 + $0x70] sm:$0xf] %v818
        %883 = vst [vmem:[%s322 + $0x74] sm:$0xf] %v819
        %884 = vst [vmem:[%s322 + $0x78] sm:$0xf] %v820
        %885 = vst [vmem:[%s322 + $0x7c] sm:$0xf] %v821
        %v886 = vld [vmem:[#allocation7] sm:$0xf]
        %v887 = vld [vmem:[#allocation7 + $0x4] sm:$0xf]
        %v888 = vld [vmem:[#allocation7 + $0x8] sm:$0xf]
        %v889 = vld [vmem:[#allocation7 + $0xc] sm:$0xf]
        %v890 = vld [vmem:[#allocation7 + $0x10] sm:$0xf]
        %v891 = vld [vmem:[#allocation7 + $0x14] sm:$0xf]
        %v892 = vld [vmem:[#allocation7 + $0x18] sm:$0xf]
        %v893 = vld [vmem:[#allocation7 + $0x1c] sm:$0xf]
        %v894 = vld [vmem:[#allocation7 + $0x20] sm:$0xf]
        %v895 = vld [vmem:[#allocation7 + $0x24] sm:$0xf]
        %v896 = vld [vmem:[#allocation7 + $0x28] sm:$0xf]
        %v897 = vld [vmem:[#allocation7 + $0x2c] sm:$0xf]
        %v898 = vld [vmem:[#allocation7 + $0x30] sm:$0xf]
        %v899 = vld [vmem:[#allocation7 + $0x34] sm:$0xf]
        %v900 = vld [vmem:[#allocation7 + $0x38] sm:$0xf]
        %v901 = vld [vmem:[#allocation7 + $0x3c] sm:$0xf]
        %v902 = vld [vmem:[%s4] sm:$0x1]
        %v904 = vlaneseq
        %v905 = vshrl.u32 %v904, 7
        %v906 = vsub.s32 0, %v905
        %v907 = vrot.slane %v902, %v906
        %v925 = vunpack.c.l.b16 %v886
        %v926 = vunpack.c.l.b16 %v887
        %v927 = vunpack.c.l.b16 %v888
        %v928 = vunpack.c.l.b16 %v889
        %v929 = vunpack.c.l.b16 %v890
        %v930 = vunpack.c.l.b16 %v891
        %v931 = vunpack.c.l.b16 %v892
        %v932 = vunpack.c.l.b16 %v893
        %v933 = vunpack.c.l.b16 %v894
        %v934 = vunpack.c.l.b16 %v895
        %v935 = vunpack.c.l.b16 %v896
        %v936 = vunpack.c.l.b16 %v897
        %v937 = vunpack.c.l.b16 %v898
        %v938 = vunpack.c.l.b16 %v899
        %v939 = vunpack.c.l.b16 %v900
        %v940 = vunpack.c.l.b16 %v901
        %v941 = vpack.c.b16 %v926, %v925
        %v942 = vpack.c.b16 %v928, %v927
        %v943 = vpack.c.b16 %v930, %v929
        %v944 = vpack.c.b16 %v932, %v931
        %v945 = vpack.c.b16 %v934, %v933
        %v946 = vpack.c.b16 %v936, %v935
        %v947 = vpack.c.b16 %v938, %v937
        %v948 = vpack.c.b16 %v940, %v939
        %957 = vmatprep.subr.bf16.mxu0 0
        %958 = vmatpush1.bf16.msra.mxu0 %v941
        %959 = vmatprep.subr.bf16.mxu0 0
        %960 = vmatpush1.bf16.msra.mxu0 %v942
        %961 = vmatprep.subr.bf16.mxu0 0
        %962 = vmatpush1.bf16.msra.mxu0 %v943
        %963 = vmatprep.subr.bf16.mxu0 0
        %964 = vmatpush1.bf16.msra.mxu0 %v944
        %965 = vmatprep.subr.bf16.mxu0 0
        %966 = vmatpush1.bf16.msra.mxu0 %v945
        %967 = vmatprep.subr.bf16.mxu0 0
        %968 = vmatpush1.bf16.msra.mxu0 %v946
        %969 = vmatprep.subr.bf16.mxu0 0
        %970 = vmatpush1.bf16.msra.mxu0 %v947
        %971 = vmatprep.subr.bf16.mxu0 0
        %972 = vmatpush1.bf16.msra.mxu0 %v948
        %973 = vmatprep.subr.bf16.mxu0 0
        %974 = vmatpush1.bf16.msra.mxu0 0
        %975 = vmatprep.subr.bf16.mxu0 0
        %976 = vmatpush1.bf16.msra.mxu0 0
        %977 = vmatprep.subr.bf16.mxu0 0
        %978 = vmatpush1.bf16.msra.mxu0 0
        %979 = vmatprep.subr.bf16.mxu0 0
        %980 = vmatpush1.bf16.msra.mxu0 0
        %981 = vmatprep.subr.bf16.mxu0 0
        %982 = vmatpush1.bf16.msra.mxu0 0
        %983 = vmatprep.subr.bf16.mxu0 0
        %984 = vmatpush1.bf16.msra.mxu0 0
        %985 = vmatprep.subr.bf16.mxu0 0
        %986 = vmatpush1.bf16.msra.mxu0 0
        %987 = vmatprep.subr.bf16.mxu0 0
        %988 = vmatpush1.bf16.msra.mxu0 0
        %989 = vmatprep.mubr.bf16.mxu0 0
        %990 = vmatmul.mubr.bf16.gmra.mrb[0].mxu0 %v453
        %v991 = vpop.f32.mrb[0].mxu0
        %v992 = vadd.f32 %v907, %v991
        %v993 = vpop.f32.mrb[0].mxu0
        %v994 = vpop.f32.mrb[0].mxu0
        %v995 = vadd.f32 %v907, %v994
        %v996 = vpop.f32.mrb[0].mxu0
        %997 = vmatprep.mubr.bf16.mxu0 0
        %998 = vmatmul.mubr.bf16.gmra.mrb[0].mxu0 %v454
        %v999 = vpop.f32.mrb[0].mxu0
        %v1000 = vadd.f32 %v907, %v999
        %v1001 = vpop.f32.mrb[0].mxu0
        %v1002 = vpop.f32.mrb[0].mxu0
        %v1003 = vadd.f32 %v907, %v1002
        %v1004 = vpop.f32.mrb[0].mxu0
        %1005 = vmatprep.mubr.bf16.mxu0 0
        %1006 = vmatmul.mubr.bf16.gmra.mrb[0].mxu0 %v455
        %v1007 = vpop.f32.mrb[0].mxu0
        %v1008 = vadd.f32 %v907, %v1007
        %v1009 = vpop.f32.mrb[0].mxu0
        %v1010 = vpop.f32.mrb[0].mxu0
        %v1011 = vadd.f32 %v907, %v1010
        %v1012 = vpop.f32.mrb[0].mxu0
        %1013 = vmatprep.mubr.bf16.mxu0 0
        %1014 = vmatmul.mubr.bf16.gmra.mrb[0].mxu0 %v456
        %v1015 = vpop.f32.mrb[0].mxu0
        %v1016 = vadd.f32 %v907, %v1015
        %v1017 = vpop.f32.mrb[0].mxu0
        %v1018 = vpop.f32.mrb[0].mxu0
        %v1019 = vadd.f32 %v907, %v1018
        %v1020 = vpop.f32.mrb[0].mxu0
        %1021 = vmatprep.mubr.bf16.mxu0 0
        %1022 = vmatmul.mubr.bf16.gmra.mrb[0].mxu0 %v457
        %v1023 = vpop.f32.mrb[0].mxu0
        %v1024 = vadd.f32 %v907, %v1023
        %v1025 = vpop.f32.mrb[0].mxu0
        %v1026 = vpop.f32.mrb[0].mxu0
        %v1027 = vadd.f32 %v907, %v1026
        %v1028 = vpop.f32.mrb[0].mxu0
        %1029 = vmatprep.mubr.bf16.mxu0 0
        %1030 = vmatmul.mubr.bf16.gmra.mrb[0].mxu0 %v458
        %v1031 = vpop.f32.mrb[0].mxu0
        %v1032 = vadd.f32 %v907, %v1031
        %v1033 = vpop.f32.mrb[0].mxu0
        %v1034 = vpop.f32.mrb[0].mxu0
        %v1035 = vadd.f32 %v907, %v1034
        %v1036 = vpop.f32.mrb[0].mxu0
        %1037 = vmatprep.mubr.bf16.mxu0 0
        %1038 = vmatmul.mubr.bf16.gmra.mrb[0].mxu0 %v459
        %v1039 = vpop.f32.mrb[0].mxu0
        %v1040 = vadd.f32 %v907, %v1039
        %v1041 = vpop.f32.mrb[0].mxu0
        %v1042 = vpop.f32.mrb[0].mxu0
        %v1043 = vadd.f32 %v907, %v1042
        %v1044 = vpop.f32.mrb[0].mxu0
        %1045 = vmatprep.mubr.bf16.mxu0 0
        %1046 = vmatmul.mubr.bf16.gmra.mrb[0].mxu0 %v460
        %v1047 = vpop.f32.mrb[0].mxu0
        %v1048 = vadd.f32 %v907, %v1047
        %v1049 = vpop.f32.mrb[0].mxu0
        %v1050 = vpop.f32.mrb[0].mxu0
        %v1051 = vadd.f32 %v907, %v1050
        %v1052 = vpop.f32.mrb[0].mxu0
        %1053 = vmatprep.mubr.bf16.mxu0 0
        %1054 = vmatmul.mubr.bf16.gmra.mrb[0].mxu0 %v461
        %v1055 = vpop.f32.mrb[0].mxu0
        %v1056 = vadd.f32 %v907, %v1055
        %v1057 = vpop.f32.mrb[0].mxu0
        %v1058 = vpop.f32.mrb[0].mxu0
        %v1059 = vadd.f32 %v907, %v1058
        %v1060 = vpop.f32.mrb[0].mxu0
        %1061 = vmatprep.mubr.bf16.mxu0 0
        %1062 = vmatmul.mubr.bf16.gmra.mrb[0].mxu0 %v462
        %v1063 = vpop.f32.mrb[0].mxu0
        %v1064 = vadd.f32 %v907, %v1063
        %v1065 = vpop.f32.mrb[0].mxu0
        %v1066 = vpop.f32.mrb[0].mxu0
        %v1067 = vadd.f32 %v907, %v1066
        %v1068 = vpop.f32.mrb[0].mxu0
        %1069 = vmatprep.mubr.bf16.mxu0 0
        %1070 = vmatmul.mubr.bf16.gmra.mrb[0].mxu0 %v463
        %v1071 = vpop.f32.mrb[0].mxu0
        %v1072 = vadd.f32 %v907, %v1071
        %v1073 = vpop.f32.mrb[0].mxu0
        %v1074 = vpop.f32.mrb[0].mxu0
        %v1075 = vadd.f32 %v907, %v1074
        %v1076 = vpop.f32.mrb[0].mxu0
        %1077 = vmatprep.mubr.bf16.mxu0 0
        %1078 = vmatmul.mubr.bf16.gmra.mrb[0].mxu0 %v464
        %v1079 = vpop.f32.mrb[0].mxu0
        %v1080 = vadd.f32 %v907, %v1079
        %v1081 = vpop.f32.mrb[0].mxu0
        %v1082 = vpop.f32.mrb[0].mxu0
        %v1083 = vadd.f32 %v907, %v1082
        %v1084 = vpop.f32.mrb[0].mxu0
        %1085 = vmatprep.mubr.bf16.mxu0 0
        %1086 = vmatmul.mubr.bf16.gmra.mrb[0].mxu0 %v465
        %v1087 = vpop.f32.mrb[0].mxu0
        %v1088 = vadd.f32 %v907, %v1087
        %v1089 = vpop.f32.mrb[0].mxu0
        %v1090 = vpop.f32.mrb[0].mxu0
        %v1091 = vadd.f32 %v907, %v1090
        %v1092 = vpop.f32.mrb[0].mxu0
        %1093 = vmatprep.mubr.bf16.mxu0 0
        %1094 = vmatmul.mubr.bf16.gmra.mrb[0].mxu0 %v466
        %v1095 = vpop.f32.mrb[0].mxu0
        %v1096 = vadd.f32 %v907, %v1095
        %v1097 = vpop.f32.mrb[0].mxu0
        %v1098 = vpop.f32.mrb[0].mxu0
        %v1099 = vadd.f32 %v907, %v1098
        %v1100 = vpop.f32.mrb[0].mxu0
        %1101 = vmatprep.mubr.bf16.mxu0 0
        %1102 = vmatmul.mubr.bf16.gmra.mrb[0].mxu0 %v467
        %v1103 = vpop.f32.mrb[0].mxu0
        %v1104 = vadd.f32 %v907, %v1103
        %v1105 = vpop.f32.mrb[0].mxu0
        %v1106 = vpop.f32.mrb[0].mxu0
        %v1107 = vadd.f32 %v907, %v1106
        %v1108 = vpop.f32.mrb[0].mxu0
        %1109 = vmatprep.mubr.bf16.mxu0 0
        %1110 = vmatmul.mubr.bf16.gmra.mrb[0].mxu0 %v468
        %v1111 = vpop.f32.mrb[0].mxu0
        %v1112 = vadd.f32 %v907, %v1111
        %v1113 = vpop.f32.mrb[0].mxu0
        %v1114 = vpop.f32.mrb[0].mxu0
        %v1115 = vadd.f32 %v907, %v1114
        %v1116 = vpop.f32.mrb[0].mxu0
        %1117 = vdwg.mxu0
        %v1118 = vpack.c.bf16 %v995, %v992
        %v1119 = vpack.c.bf16 %v1003, %v1000
        %v1120 = vpack.c.bf16 %v1011, %v1008
        %v1121 = vpack.c.bf16 %v1019, %v1016
        %v1122 = vpack.c.bf16 %v1027, %v1024
        %v1123 = vpack.c.bf16 %v1035, %v1032
        %v1124 = vpack.c.bf16 %v1043, %v1040
        %v1125 = vpack.c.bf16 %v1051, %v1048
        %v1126 = vpack.c.bf16 %v1059, %v1056
        %v1127 = vpack.c.bf16 %v1067, %v1064
        %v1128 = vpack.c.bf16 %v1075, %v1072
        %v1129 = vpack.c.bf16 %v1083, %v1080
        %v1130 = vpack.c.bf16 %v1091, %v1088
        %v1131 = vpack.c.bf16 %v1099, %v1096
        %v1132 = vpack.c.bf16 %v1107, %v1104
        %v1133 = vpack.c.bf16 %v1115, %v1112
        %v1150 = vunpack.c.l.b16 %v1118
        %v1151 = vunpack.c.h.b16 %v1118
        %v1152 = vunpack.c.l.b16 %v1119
        %v1153 = vunpack.c.h.b16 %v1119
        %v1154 = vunpack.c.l.b16 %v1120
        %v1155 = vunpack.c.h.b16 %v1120
        %v1156 = vunpack.c.l.b16 %v1121
        %v1157 = vunpack.c.h.b16 %v1121
        %v1158 = vunpack.c.l.b16 %v1122
        %v1159 = vunpack.c.h.b16 %v1122
        %v1160 = vunpack.c.l.b16 %v1123
        %v1161 = vunpack.c.h.b16 %v1123
        %v1162 = vunpack.c.l.b16 %v1124
        %v1163 = vunpack.c.h.b16 %v1124
        %v1164 = vunpack.c.l.b16 %v1125
        %v1165 = vunpack.c.h.b16 %v1125
        %v1166 = vunpack.c.l.b16 %v1126
        %v1167 = vunpack.c.h.b16 %v1126
        %v1168 = vunpack.c.l.b16 %v1127
        %v1169 = vunpack.c.h.b16 %v1127
        %v1170 = vunpack.c.l.b16 %v1128
        %v1171 = vunpack.c.h.b16 %v1128
        %v1172 = vunpack.c.l.b16 %v1129
        %v1173 = vunpack.c.h.b16 %v1129
        %v1174 = vunpack.c.l.b16 %v1130
        %v1175 = vunpack.c.h.b16 %v1130
        %v1176 = vunpack.c.l.b16 %v1131
        %v1177 = vunpack.c.h.b16 %v1131
        %v1178 = vunpack.c.l.b16 %v1132
        %v1179 = vunpack.c.h.b16 %v1132
        %v1180 = vunpack.c.l.b16 %v1133
        %v1181 = vunpack.c.h.b16 %v1133
        %v1182 = vpack.c.b16 %v1150, %v1150
        %v1183 = vpack.c.b16 %v1151, %v1151
        %v1184 = vpack.c.b16 %v1152, %v1152
        %v1185 = vpack.c.b16 %v1153, %v1153
        %v1186 = vpack.c.b16 %v1154, %v1154
        %v1187 = vpack.c.b16 %v1155, %v1155
        %v1188 = vpack.c.b16 %v1156, %v1156
        %v1189 = vpack.c.b16 %v1157, %v1157
        %v1190 = vpack.c.b16 %v1158, %v1158
        %v1191 = vpack.c.b16 %v1159, %v1159
        %v1192 = vpack.c.b16 %v1160, %v1160
        %v1193 = vpack.c.b16 %v1161, %v1161
        %v1194 = vpack.c.b16 %v1162, %v1162
        %v1195 = vpack.c.b16 %v1163, %v1163
        %v1196 = vpack.c.b16 %v1164, %v1164
        %v1197 = vpack.c.b16 %v1165, %v1165
        %v1198 = vpack.c.b16 %v1166, %v1166
        %v1199 = vpack.c.b16 %v1167, %v1167
        %v1200 = vpack.c.b16 %v1168, %v1168
        %v1201 = vpack.c.b16 %v1169, %v1169
        %v1202 = vpack.c.b16 %v1170, %v1170
        %v1203 = vpack.c.b16 %v1171, %v1171
        %v1204 = vpack.c.b16 %v1172, %v1172
        %v1205 = vpack.c.b16 %v1173, %v1173
        %v1206 = vpack.c.b16 %v1174, %v1174
        %v1207 = vpack.c.b16 %v1175, %v1175
        %v1208 = vpack.c.b16 %v1176, %v1176
        %v1209 = vpack.c.b16 %v1177, %v1177
        %v1210 = vpack.c.b16 %v1178, %v1178
        %v1211 = vpack.c.b16 %v1179, %v1179
        %v1212 = vpack.c.b16 %v1180, %v1180
        %v1213 = vpack.c.b16 %v1181, %v1181
        %1246 = vst [vmem:[%s329] sm:$0xf] %v1182
        %1247 = vst [vmem:[%s329 + $0x4] sm:$0xf] %v1183
        %1248 = vst [vmem:[%s329 + $0x8] sm:$0xf] %v1184
        %1249 = vst [vmem:[%s329 + $0xc] sm:$0xf] %v1185
        %1250 = vst [vmem:[%s329 + $0x10] sm:$0xf] %v1186
        %1251 = vst [vmem:[%s329 + $0x14] sm:$0xf] %v1187
        %1252 = vst [vmem:[%s329 + $0x18] sm:$0xf] %v1188
        %1253 = vst [vmem:[%s329 + $0x1c] sm:$0xf] %v1189
        %1254 = vst [vmem:[%s329 + $0x20] sm:$0xf] %v1190
        %1255 = vst [vmem:[%s329 + $0x24] sm:$0xf] %v1191
        %1256 = vst [vmem:[%s329 + $0x28] sm:$0xf] %v1192
        %1257 = vst [vmem:[%s329 + $0x2c] sm:$0xf] %v1193
        %1258 = vst [vmem:[%s329 + $0x30] sm:$0xf] %v1194
        %1259 = vst [vmem:[%s329 + $0x34] sm:$0xf] %v1195
        %1260 = vst [vmem:[%s329 + $0x38] sm:$0xf] %v1196
        %1261 = vst [vmem:[%s329 + $0x3c] sm:$0xf] %v1197
        %1262 = vst [vmem:[%s329 + $0x40] sm:$0xf] %v1198
        %1263 = vst [vmem:[%s329 + $0x44] sm:$0xf] %v1199
        %1264 = vst [vmem:[%s329 + $0x48] sm:$0xf] %v1200
        %1265 = vst [vmem:[%s329 + $0x4c] sm:$0xf] %v1201
        %1266 = vst [vmem:[%s329 + $0x50] sm:$0xf] %v1202
        %1267 = vst [vmem:[%s329 + $0x54] sm:$0xf] %v1203
        %1268 = vst [vmem:[%s329 + $0x58] sm:$0xf] %v1204
        %1269 = vst [vmem:[%s329 + $0x5c] sm:$0xf] %v1205
        %1270 = vst [vmem:[%s329 + $0x60] sm:$0xf] %v1206
        %1271 = vst [vmem:[%s329 + $0x64] sm:$0xf] %v1207
        %1272 = vst [vmem:[%s329 + $0x68] sm:$0xf] %v1208
        %1273 = vst [vmem:[%s329 + $0x6c] sm:$0xf] %v1209
        %1274 = vst [vmem:[%s329 + $0x70] sm:$0xf] %v1210
        %1275 = vst [vmem:[%s329 + $0x74] sm:$0xf] %v1211
        %1276 = vst [vmem:[%s329 + $0x78] sm:$0xf] %v1212
        %1277 = vst [vmem:[%s329 + $0x7c] sm:$0xf] %v1213
        %s1278 = sand.u32 %s162, 1
        %s1279 = scalar_lea.sflag [#allocation4], %s1278
        %s1280 = sand.u32 %s162, 1
        %s1281 = smul.addr %s1280, 128
        %s1282 = scalar_lea.vmem [#allocation8], %s1281
        %s1283 = sand.u32 %s190, 1
        %s1284 = scalar_lea.sflag [#allocation10], %s1283
        %s1285 = sand.u32 %s190, 1
        %s1286 = smul.addr %s1285, 128
        %s1287 = scalar_lea.vmem [#allocation9], %s1286
        // Predicated region
        $region53: #{tpu_custom_call.1} parent=39 // pred_check
          %p1288 = pneg %p172
        $region54: #{tpu_custom_call.1} parent=39 // pred_check_branch
          %1290 = sbr.rel (%p1288) target = $region56
        $region55: #{tpu_custom_call.1} parent=39 // pred_region
          %s1291 = smul.u32 32, %s33
          %s1293 = ssub.s32 2048, 2048
          %1294 = vsyncadd %s1279, %s1293
          %s1295 = smul.addr %s32, 32
          %s1296 = sadd.s32 %s1291, %s1295
          %s1297 = smul.addr %s1296, 64
          %s1298 = scalar_lea.hbm %s5, %s1297
          %s1299 = sshll.u32 %s1282, 4
          %s1300 = int_to_ptr.vmem [resolvable:$true] %s1299
          %1305 = dma.vmem_to_hbm [thread:$0]  %s1300, 2048, %s1298, %s1279, 64, 64, 4
        $region56: #{tpu_custom_call.1} parent=39 // pred_fallthru
          _
        // Predicated region
        $region57: #{tpu_custom_call.1} parent=39 // pred_check
          %p1306 = pneg %p200
        $region58: #{tpu_custom_call.1} parent=39 // pred_check_branch
          %1308 = sbr.rel (%p1306) target = $region60
        $region59: #{tpu_custom_call.1} parent=39 // pred_region
          %s1309 = smul.u32 32, %s33
          %s1311 = ssub.s32 2048, 2048
          %1312 = vsyncadd %s1284, %s1311
          %s1313 = smul.addr %s32, 32
          %s1314 = sadd.s32 %s1309, %s1313
          %s1315 = smul.addr %s1314, 64
          %s1316 = scalar_lea.hbm %s6, %s1315
          %s1317 = sshll.u32 %s1287, 4
          %s1318 = int_to_ptr.vmem [resolvable:$true] %s1317
          %1323 = dma.vmem_to_hbm [thread:$0]  %s1318, 2048, %s1316, %s1284, 64, 64, 4
        $region60: #{tpu_custom_call.1} parent=39 // pred_fallthru
          _
      $region40: #{tpu_custom_call.1} parent=5 // pred_fallthru
        _
      %p1324 = scmp.le.s32.totalorder 2, %s23
      // Predicated region
      $region61: #{tpu_custom_call.1} parent=5 // pred_check
        %p1325 = pneg %p1324
      $region62: #{tpu_custom_call.1} parent=5 // pred_check_branch
        %1327 = sbr.rel (%p1325) target = $region64
      $region63: #{tpu_custom_call.1} parent=5 // pred_region
        %s1328 = ssub.s32 %s23, 2
        // Predicated region
        $region65: #{tpu_custom_call.1} parent=63 // pred_check
          %p1329 = pneg %p178
        $region66: #{tpu_custom_call.1} parent=63 // pred_check_branch
          %1331 = sbr.rel (%p1329) target = $region68
        $region67: #{tpu_custom_call.1} parent=63 // pred_region
          %s1332 = sand.u32 %s163, 1
          %s1333 = scalar_lea.sflag [#allocation4], %s1332
          %s1334 = sand.u32 %s163, 1
          %s1335 = smul.addr %s1334, 128
          %s1336 = scalar_lea.vmem [#allocation8], %s1335
          %1337 = dma.done %s1333, 2048
        $region68: #{tpu_custom_call.1} parent=63 // pred_fallthru
          _
        // Predicated region
        $region69: #{tpu_custom_call.1} parent=63 // pred_check
          %p1338 = pneg %p206
        $region70: #{tpu_custom_call.1} parent=63 // pred_check_branch
          %1340 = sbr.rel (%p1338) target = $region72
        $region71: #{tpu_custom_call.1} parent=63 // pred_region
          %s1341 = sand.u32 %s191, 1
          %s1342 = scalar_lea.sflag [#allocation10], %s1341
          %s1343 = sand.u32 %s191, 1
          %s1344 = smul.addr %s1343, 128
          %s1345 = scalar_lea.vmem [#allocation9], %s1344
          %1346 = dma.done %s1342, 2048
        $region72: #{tpu_custom_call.1} parent=63 // pred_fallthru
          _
      $region64: #{tpu_custom_call.1} parent=5 // pred_fallthru
        _
    $region6: #{tpu_custom_call.1} parent=1 // loop_footer
      %s27 = sadd.s32 1, %s23
    $region7: #{tpu_custom_call.1} parent=1 // loop_footer_branch
      %22 = sbr.rel target = $region3
    $region8: #{tpu_custom_call.1} parent=1 // loop_exit
      _
    %1347 = vsyncpa [#allocation3], 1
    %s1348 = scalar_lea.sflag [#allocation3], 1
    %1349 = vsyncpa %s1348, 1
    %1350 = vsyncpa [#allocation6], 1
    %1351 = vsyncpa [#allocation4], 1
    %s1352 = scalar_lea.sflag [#allocation4], 1
    %1353 = vsyncpa %s1352, 1
    %1354 = vsyncpa [#allocation10], 1
    %s1355 = scalar_lea.sflag [#allocation10], 1
    %1356 = vsyncpa %s1355, 1

</llo_original>
